<compile_context>
chip_gen: v7x
topology: tpu7x:2x2x1
jax: 0.10.0
libtpu: 0.0.40
codegen_flags: <defaults>
</compile_context>

<pallas_src>
import functools

import jax
import jax.numpy as jnp
from jax.experimental import pallas as pl
from jax.experimental.pallas import tpu as pltpu


def _normalize_kernel(x_ref, o_ref, *, power: float):
    # Whole hot path in-kernel: pow -> sum over features -> root -> scale.
    x = x_ref[...].astype(jnp.float32)
    if power == 2:
        s = jnp.sum(x * x, axis=-1, keepdims=True)
        inv = jax.lax.rsqrt(s)                  # EUP op; frees the VALU slot
    else:
        p_int = int(power) if float(power) == int(power) else None
        if p_int is not None and 1 <= p_int <= 4:
            # Integer-power expansion keeps the per-element work on the VPU
            # (jnp.power with a float exponent would hit the single EUP pipe
            # per element).  Matches torch's x.pow(p): no abs().
            xp = x
            for _ in range(p_int - 1):
                xp = xp * x
        else:
            xp = jnp.power(x, power)            # matches torch x.pow(p)
        s = jnp.sum(xp, axis=-1, keepdims=True)
        # Only (TN, 1) elements -> cheap even via log/exp.
        inv = jnp.power(s, -1.0 / power)
    # Match torch.div semantics (no epsilon); broadcast the (TN,1) scale once.
    o_ref[...] = (x * inv).astype(o_ref.dtype)


def _choose_row_tile(n: int, d: int, itemsize: int) -> int:
    """Dtype-/VMEM-aware row-tile size."""
    sub = max(8, 32 // itemsize)                # sublane multiple (8 f32, 16 bf16, 32 i8)
    # Keep double-buffered in+out f32 working set (~4 * tn * d * 4 B) under
    # ~16 MiB so it fits comfortably on v7x (64 MiB physical VMEM) as well as
    # v5e/v6e.
    budget_bytes = 16 * 1024 * 1024
    tn_cap = max(sub, (budget_bytes // (4 * d * 4)) // sub * sub)
    target = min(1024, tn_cap)                  # 512-1024 rows ~ HBM roofline
    if n <= target:
        # Tiny input: single grid step covering everything (rounded up to the
        # sublane multiple); avoids all per-step pipeline overhead.
        return ((n + sub - 1) // sub) * sub
    return target


def normalize(x: jax.Array, power: float = 2) -> jax.Array:
    """Lp-normalize rows of a (N, D) array, equivalent to Normalize(power)(x)."""
    n, d = x.shape
    itemsize = jnp.dtype(x.dtype).itemsize
    tn = _choose_row_tile(n, d, itemsize)

    # Pad rows to a multiple of the tile (padded all-zero rows produce NaN
    # rows that are sliced off below -- never observed by the caller).
    n_pad = ((n + tn - 1) // tn) * tn
    # Keep the output lane-dense (unmasked vst): pad the feature axis to a
    # multiple of 128.  Zero padding contributes 0 to sum(x^p) for p > 0, so
    # the per-row norm is unchanged.
    d_pad = ((d + 127) // 128) * 128 if (d % 128 != 0 and power > 0) else d

    x_in = x
    if n_pad != n or d_pad != d:
        x_in = jnp.pad(x, ((0, n_pad - n), (0, d_pad - d)))

    kernel = functools.partial(_normalize_kernel, power=power)
    out = pl.pallas_call(
        kernel,
        out_shape=jax.ShapeDtypeStruct((n_pad, d_pad), x.dtype),
        grid_spec=pltpu.PrefetchScalarGridSpec(
            num_scalar_prefetch=0,
            grid=(n_pad // tn,),
            in_specs=[pl.BlockSpec((tn, d_pad), lambda i: (i, 0))],
            out_specs=pl.BlockSpec((tn, d_pad), lambda i: (i, 0)),
        ),
        compiler_params=pltpu.CompilerParams(
            dimension_semantics=("parallel",),   # shards row-grid across TCs on v7x
            vmem_limit_bytes=48 * 1024 * 1024,   # headroom for large tiles, all gens
        ),
    )(x_in)

    if n_pad != n or d_pad != d:
        out = out[:n, :d]
    return out


def _reference(x: jax.Array, power: float = 2) -> jax.Array:
    norm = jnp.power(jnp.sum(jnp.power(x, power), axis=1, keepdims=True),
                     1.0 / power)
    return x / norm


if __name__ == "__main__":
    key = jax.random.PRNGKey(0)
    # Small shapes implied by the forward: a batch of feature vectors (N, D).
    N, D = 16, 128
    x = jax.random.normal(key, (N, D), dtype=jnp.float32)

    out = normalize(x, power=2)
    jax.block_until_ready(out)

    ref = _reference(x, power=2)
    assert out.shape == x.shape and out.dtype == x.dtype
    assert jnp.allclose(out, ref, atol=1e-5, rtol=1e-5), "mismatch vs reference"

    # Also exercise a larger, multi-tile shape (ragged rows) for coverage.
    key2 = jax.random.PRNGKey(1)
    x2 = jax.random.normal(key2, (2050, 256), dtype=jnp.float32)
    out2 = normalize(x2, power=2)
    jax.block_until_ready(out2)
    assert jnp.allclose(out2, _reference(x2, power=2), atol=1e-5, rtol=1e-5)

    print("KERNEL_OK")
</pallas_src>

<mosaic_0001>
module attributes {stable_mosaic.version = 11 : i64} {
  func.func @_normalize_kernel(%arg0: i32, %arg1: memref<16x128xf32, #tpu.memory_space<vmem>>, %arg2: memref<16x128xf32, #tpu.memory_space<vmem>>) attributes {dimension_semantics = [#tpu.dimension_semantics<parallel>], iteration_bounds = array<i64: 1>, scalar_prefetch = 0 : i64, scratch_operands = 0 : i64, tpu.core_type = #tpu.core_type<tc>, window_params = [{transform_indices = @transform_0, window_bounds = array<i64: 16, 128>}, {transform_indices = @transform_1, window_bounds = array<i64: 16, 128>}]} {
    %c0 = arith.constant 0 : index
    %c0_0 = arith.constant 0 : index
    %0 = vector.load %arg1[%c0, %c0_0] : memref<16x128xf32, #tpu.memory_space<vmem>>, vector<16x128xf32>
    %1 = arith.mulf %0, %0 : vector<16x128xf32>
    %cst = arith.constant dense<0.000000e+00> : vector<16xf32>
    %2 = vector.multi_reduction <add>, %1, %cst [1] : vector<16x128xf32> to vector<16xf32>
    %3 = vector.shape_cast %2 : vector<16xf32> to vector<16x1xf32>
    %4 = math.rsqrt %3 : vector<16x1xf32>
    %5 = vector.broadcast %4 : vector<16x1xf32> to vector<16x128xf32>
    %6 = arith.mulf %0, %5 : vector<16x128xf32>
    %c0_1 = arith.constant 0 : index
    %c0_2 = arith.constant 0 : index
    %7 = vector.load %arg2[%c0_1, %c0_2] : memref<16x128xf32, #tpu.memory_space<vmem>>, vector<16x128xf32>
    tpu.vector_store %arg2[%c0_1, %c0_2], %6 {strides = array<i32>} : memref<16x128xf32, #tpu.memory_space<vmem>>, vector<16x128xf32>,
    return
  }
  func.func @transform_0(%arg0: i32) -> (i32, i32) {
    %c0_i32 = arith.constant 0 : i32
    %c0_i32_0 = arith.constant 0 : i32
    return %arg0, %c0_i32 : i32, i32
  }
  func.func @transform_1(%arg0: i32) -> (i32, i32) {
    %c0_i32 = arith.constant 0 : i32
    %c0_i32_0 = arith.constant 0 : i32
    return %arg0, %c0_i32 : i32, i32
  }
}

</mosaic_0001>

<llo_original>
// kernel: tpu_custom_call.1
$region0: #{tpu_custom_call.1}
  #allocation0 [shape = 'u32[]', space=smem, size = 0x4, offset = 0x4, fixed_abs, tag = 'smem constant byte address 0x4 - core index']
  #allocation1 [shape = 'u32[144,128]{1,0:T(1,128)}', space=vmem, size = 0x12000, scoped, tag = 'internal scratch']
  %s0 = inlined_call_operand.hbm [shape: f32[16,128], index: 0, kind: input, shape index: {}]
  %s1 = inlined_call_operand.hbm [shape: f32[16,128], index: 1, kind: output, shape index: {}]
  %s2 = sld [smem:[#allocation0]]
  $region18: #{tpu_custom_call.1} parent=0
    _
  %s4 = ssub.s32 1, %s2
  %s5 = scalar_select 0, %s4, %s2
  $region1: #{tpu_custom_call.1} parent=0
    #allocation2 [shape = 'u8[8192]{0}', space=vmem, size = 0x2000, scoped, tag = 'input window, operand 0, single buffered']
    #allocation3 [shape = 's32[1]{0}', space=sflag, size = 0x4, scoped, tag = 'scoped memory for tpu_custom_call.1']
    #allocation4 [shape = 's32[1]{0}', space=sflag, size = 0x4, scoped, tag = 'scoped memory for tpu_custom_call.1']
    #allocation5 [shape = 'u8[8192]{0}', space=vmem, size = 0x2000, scoped, tag = 'output window, operand 0, single buffered']
    %6 = vsyncpa [#allocation3], 0
    %7 = vsyncpa [#allocation4], 0
    // Predicated region
    $region2: #{tpu_custom_call.1} parent=1 // pred_check
      _
    $region3: #{tpu_custom_call.1} parent=1 // pred_check_branch
      %9 = sbr.rel (0) target = $region5
    $region4: #{tpu_custom_call.1} parent=1 // pred_region
      %s11 = ssub.s32 256, 256
      %12 = vsyncadd [#allocation3], %s11
      %s13 = sshll.u32 [#allocation2], 4
      %s14 = int_to_ptr.vmem [resolvable:$true] %s13
      %19 = dma.hbm_to_vmem [thread:$0]  %s0, 256, %s14, [#allocation3], 128, 128, 8
    $region5: #{tpu_custom_call.1} parent=1 // pred_fallthru
      _
    // Predicated region
    $region6: #{tpu_custom_call.1} parent=1 // pred_check
      _
    $region7: #{tpu_custom_call.1} parent=1 // pred_check_branch
      %21 = sbr.rel (0) target = $region9
    $region8: #{tpu_custom_call.1} parent=1 // pred_region
      %22 = dma.done [#allocation3], 256
    $region9: #{tpu_custom_call.1} parent=1 // pred_fallthru
      _
    %v23 = vld [vmem:[#allocation2] sm:$0xff]
    %v24 = vld [vmem:[#allocation2 + $0x8] sm:$0xff]
    %v25 = vmul.f32 %v23, %v23
    %v26 = vmul.f32 %v24, %v24
    %27 = vadd.xlane.f32.xlu0 %v25
    %v28 = vpop.xlane.xlu0 %27
    %29 = vadd.xlane.f32.xlu0 %v26
    %v30 = vpop.xlane.xlu0 %29
    %v31 = vrsqrt.pop %v28
    %v32 = vrsqrt.pop %v30
    %v33 = vmul.f32 %v23, %v31
    %v34 = vmul.f32 %v24, %v32
    %35 = vst [vmem:[#allocation5] sm:$0xff] %v33
    %36 = vst [vmem:[#allocation5 + $0x8] sm:$0xff] %v34
    // Predicated region
    $region10: #{tpu_custom_call.1} parent=1 // pred_check
      _
    $region11: #{tpu_custom_call.1} parent=1 // pred_check_branch
      %38 = sbr.rel (0) target = $region13
    $region12: #{tpu_custom_call.1} parent=1 // pred_region
      %s40 = ssub.s32 256, 256
      %41 = vsyncadd [#allocation4], %s40
      %s42 = sshll.u32 [#allocation5], 4
      %s43 = int_to_ptr.vmem [resolvable:$true] %s42
      %48 = dma.vmem_to_hbm [thread:$0]  %s43, 256, %s1, [#allocation4], 128, 128, 8
    $region13: #{tpu_custom_call.1} parent=1 // pred_fallthru
      _
    // Predicated region
    $region14: #{tpu_custom_call.1} parent=1 // pred_check
      _
    $region15: #{tpu_custom_call.1} parent=1 // pred_check_branch
      %50 = sbr.rel (0) target = $region17
    $region16: #{tpu_custom_call.1} parent=1 // pred_region
      %51 = dma.done [#allocation4], 256
    $region17: #{tpu_custom_call.1} parent=1 // pred_fallthru
      _
    %52 = vsyncpa [#allocation3], 1
    %53 = vsyncpa [#allocation4], 1

</llo_original>
